<compile_context>
chip_gen: v7x
topology: tpu7x:2x2x1
jax: 0.10.0
libtpu: 0.0.40
codegen_flags: <defaults>
</compile_context>

<pallas_src>
import functools

import jax
import jax.numpy as jnp
from jax.experimental import pallas as pl
from jax.experimental.pallas import tpu as pltpu


def _round_up(x, m):
    return ((x + m - 1) // m) * m


def beta_latent_kernel(x_ref, w_ref, b_ref, eps_ref, z_ref, kl_ref, *,
                       free_bits, hidden_dim):
    # Fused projection: (TILE_M, K) @ (K, 2N) -> [mu | log_var]   (single MXU pass)
    proj = jnp.dot(x_ref[...], w_ref[...],
                   preferred_element_type=jnp.float32) + b_ref[...]
    mu = proj[:, :hidden_dim]
    log_var = proj[:, hidden_dim:]

    # std = exp(0.5*log_var): one transcendental (EUP); var = std*std on the VPU.
    std = jnp.exp(0.5 * log_var)
    var = std * std

    # Reparametrization: z = mu + eps * std, eps ~ N(0, 1) (streamed in).
    z_ref[...] = (mu + eps_ref[...] * std).astype(z_ref.dtype)

    # Per-token KL: 0.5 * mean_over_hidden(mu^2 + var - 1 - log_var), clamped
    # to free_bits AFTER the mean (matches the PyTorch reference).
    kl_tok = 0.5 * jnp.mean(mu * mu + var - 1.0 - log_var, axis=-1, keepdims=True)
    kl_ref[...] = jnp.maximum(kl_tok, jnp.float32(free_bits))


def beta_latent_multidim(x, w_mu, b_mu, w_lv, b_lv, *, free_bits, masks=None,
                         rng_key=None, max_tile_m=512):
    """x: (B, S, input_dim); w_*: (input_dim, hidden_dim); b_*: (hidden_dim,) or
    (1, hidden_dim); masks: optional (B, S).
    Returns (z: (B, S, hidden_dim), kl_loss: scalar)."""
    B, S, K = x.shape
    N = w_mu.shape[1]
    M = B * S

    x2 = x.reshape(M, K).astype(jnp.float32)
    w = jnp.concatenate([w_mu, w_lv], axis=1).astype(jnp.float32)           # (K, 2N)
    b = jnp.concatenate([jnp.reshape(b_mu, (1, N)),
                         jnp.reshape(b_lv, (1, N))], axis=1).astype(jnp.float32)  # (1, 2N)

    if rng_key is None:
        rng_key = jax.random.PRNGKey(0)
    eps = jax.random.normal(rng_key, (M, N), jnp.float32)

    # --- pick TILE_M: multiple of 8 rows, double-buffered tiles + resident
    # weights kept well under the default scoped-VMEM limit (v7x-safe). ---
    w_bytes = (K * 2 * N + 2 * N) * 4 * 2                 # weights + bias, 2 bufs
    tile_budget = max(1 << 20, (24 << 20) - w_bytes)
    per_row_bytes = (K + 3 * N + 1) * 4 * 2               # x + eps + z + kl, 2 bufs
    tm = min(max_tile_m, max(8, tile_budget // per_row_bytes))
    tm = min(tm, _round_up(M, 8))
    tm = max(8, (tm // 8) * 8)
    grid = (pl.cdiv(M, tm),)

    cost = pl.CostEstimate(
        flops=2 * M * K * (2 * N) + 8 * M * N,
        transcendentals=M * N,
        bytes_accessed=4 * (M * K + 2 * M * N + 2 * K * N + 2 * N + M),
    )

    kernel = functools.partial(beta_latent_kernel,
                               free_bits=float(free_bits), hidden_dim=N)

    z2, kl_tok = pl.pallas_call(
        kernel,
        grid=grid,
        in_specs=[
            pl.BlockSpec((tm, K), lambda i: (i, 0)),        # x tile
            pl.BlockSpec((K, 2 * N), lambda i: (0, 0)),     # fused weights (resident)
            pl.BlockSpec((1, 2 * N), lambda i: (0, 0)),     # fused bias (resident)
            pl.BlockSpec((tm, N), lambda i: (i, 0)),        # eps tile
        ],
        out_specs=(
            pl.BlockSpec((tm, N), lambda i: (i, 0)),        # z tile
            pl.BlockSpec((tm, 1), lambda i: (i, 0)),        # per-token clamped KL
        ),
        out_shape=(
            jax.ShapeDtypeStruct((M, N), jnp.float32),
            jax.ShapeDtypeStruct((M, 1), jnp.float32),
        ),
        compiler_params=pltpu.CompilerParams(
            dimension_semantics=("parallel",),
        ),
        cost_estimate=cost,
    )(x2, w, b, eps)

    kl_tok = kl_tok.reshape(B, S)
    if masks is not None:
        kl_loss = (kl_tok * masks.astype(jnp.float32)).mean()
    else:
        kl_loss = kl_tok.mean()
    return z2.reshape(B, S, N), kl_loss


def init_params(key, input_dim, hidden_dim):
    """Deterministic init mimicking nn.Linear's uniform(-1/sqrt(in), 1/sqrt(in)).
    Weights stored pre-transposed as (input_dim, hidden_dim)."""
    k1, k2, k3, k4 = jax.random.split(key, 4)
    bound = 1.0 / (input_dim ** 0.5)
    w_mu = jax.random.uniform(k1, (input_dim, hidden_dim), jnp.float32, -bound, bound)
    b_mu = jax.random.uniform(k2, (1, hidden_dim), jnp.float32, -bound, bound)
    w_lv = jax.random.uniform(k3, (input_dim, hidden_dim), jnp.float32, -bound, bound)
    b_lv = jax.random.uniform(k4, (1, hidden_dim), jnp.float32, -bound, bound)
    return w_mu, b_mu, w_lv, b_lv


def _reference(x, w_mu, b_mu, w_lv, b_lv, eps, free_bits, masks):
    """Pure-JAX reference mirroring the PyTorch module (same eps)."""
    B, S, K = x.shape
    N = w_mu.shape[1]
    mu = x.reshape(-1, K) @ w_mu + b_mu
    log_var = x.reshape(-1, K) @ w_lv + b_lv
    var = jnp.exp(log_var)
    std = jnp.sqrt(var)
    z = mu + eps * std
    kl = 0.5 * jnp.mean(mu * mu + var - 1.0 - log_var, axis=-1)
    kl = jnp.maximum(kl, free_bits).reshape(B, S)
    kl_loss = (kl * masks).mean() if masks is not None else kl.mean()
    return z.reshape(B, S, N), kl_loss


if __name__ == "__main__":
    B, S, INPUT_DIM, HIDDEN_DIM = 2, 8, 32, 32
    FREE_BITS = 0.1

    root = jax.random.PRNGKey(0)
    k_param, k_x, k_mask, k_eps = jax.random.split(root, 4)

    w_mu, b_mu, w_lv, b_lv = init_params(k_param, INPUT_DIM, HIDDEN_DIM)
    x = jax.random.normal(k_x, (B, S, INPUT_DIM), jnp.float32)
    masks = jax.random.bernoulli(k_mask, 0.8, (B, S)).astype(jnp.float32)

    # With masks
    z, kl = beta_latent_multidim(x, w_mu, b_mu, w_lv, b_lv,
                                 free_bits=FREE_BITS, masks=masks, rng_key=k_eps)
    z = jax.block_until_ready(z)
    kl = jax.block_until_ready(kl)
    assert z.shape == (B, S, HIDDEN_DIM)
    assert kl.shape == ()

    # Correctness check vs pure-JAX reference (same eps).
    eps_ref = jax.random.normal(k_eps, (B * S, HIDDEN_DIM), jnp.float32)
    z_ref, kl_ref = _reference(x, w_mu, b_mu, w_lv, b_lv, eps_ref, FREE_BITS, masks)
    assert jnp.allclose(z, z_ref, atol=2e-3, rtol=2e-3)
    assert jnp.allclose(kl, kl_ref, atol=2e-3, rtol=2e-3)

    # Without masks (kl_loss.mean() branch)
    z2, kl2 = beta_latent_multidim(x, w_mu, b_mu, w_lv, b_lv,
                                   free_bits=FREE_BITS, masks=None,
                                   rng_key=jax.random.PRNGKey(7))
    jax.block_until_ready((z2, kl2))
    assert bool(jnp.isfinite(kl2))

    print("KERNEL_OK")
</pallas_src>

<mosaic_0001>
module attributes {stable_mosaic.version = 11 : i64} {
  func.func @beta_latent_kernel(%arg0: i32, %arg1: memref<16x32xf32, #tpu.memory_space<vmem>>, %arg2: memref<32x64xf32, #tpu.memory_space<vmem>>, %arg3: memref<1x64xf32, #tpu.memory_space<vmem>>, %arg4: memref<16x32xf32, #tpu.memory_space<vmem>>, %arg5: memref<16x32xf32, #tpu.memory_space<vmem>>, %arg6: memref<16x1xf32, #tpu.memory_space<vmem>>) attributes {dimension_semantics = [#tpu.dimension_semantics<parallel>], iteration_bounds = array<i64: 1>, scalar_prefetch = 0 : i64, scratch_operands = 0 : i64, tpu.core_type = #tpu.core_type<tc>, window_params = [{transform_indices = @transform_0, window_bounds = array<i64: 16, 32>}, {pipeline_mode = #tpu.pipeline_mode<synchronous>, transform_indices = @transform_1, window_bounds = array<i64: 32, 64>}, {pipeline_mode = #tpu.pipeline_mode<synchronous>, transform_indices = @transform_2, window_bounds = array<i64: 1, 64>}, {transform_indices = @transform_3, window_bounds = array<i64: 16, 32>}, {transform_indices = @transform_4, window_bounds = array<i64: 16, 32>}, {transform_indices = @transform_5, window_bounds = array<i64: 16, 1>}]} {
    %c0 = arith.constant 0 : index
    %c0_0 = arith.constant 0 : index
    %0 = vector.load %arg1[%c0, %c0_0] : memref<16x32xf32, #tpu.memory_space<vmem>>, vector<16x32xf32>
    %c0_1 = arith.constant 0 : index
    %c0_2 = arith.constant 0 : index
    %1 = vector.load %arg2[%c0_1, %c0_2] : memref<32x64xf32, #tpu.memory_space<vmem>>, vector<32x64xf32>
    %cst = arith.constant dense<0.000000e+00> : vector<16x64xf32>
    %2 = tpu.matmul %0, %1, %cst {dimension_numbers = #tpu.dot_dimension_numbers<[1], [0], [0], [1], [0, 0, 1, 1], [], []>} : vector<16x32xf32>, vector<32x64xf32>, vector<16x64xf32> -> vector<16x64xf32>
    %c0_3 = arith.constant 0 : index
    %c0_4 = arith.constant 0 : index
    %3 = vector.load %arg3[%c0_3, %c0_4] : memref<1x64xf32, #tpu.memory_space<vmem>>, vector<1x64xf32>
    %4 = vector.broadcast %3 : vector<1x64xf32> to vector<16x64xf32>
    %5 = arith.addf %2, %4 : vector<16x64xf32>
    %6 = vector.extract_strided_slice %5 {offsets = [0, 0], sizes = [16, 32], strides = [1, 1]} : vector<16x64xf32> to vector<16x32xf32>
    %7 = vector.extract_strided_slice %5 {offsets = [0, 32], sizes = [16, 32], strides = [1, 1]} : vector<16x64xf32> to vector<16x32xf32>
    %cst_5 = arith.constant 5.000000e-01 : f32
    %8 = vector.broadcast %cst_5 : f32 to vector<16x32xf32>
    %9 = arith.mulf %8, %7 : vector<16x32xf32>
    %10 = math.exp %9 : vector<16x32xf32>
    %11 = arith.mulf %10, %10 : vector<16x32xf32>
    %c0_6 = arith.constant 0 : index
    %c0_7 = arith.constant 0 : index
    %12 = vector.load %arg4[%c0_6, %c0_7] : memref<16x32xf32, #tpu.memory_space<vmem>>, vector<16x32xf32>
    %13 = arith.mulf %12, %10 : vector<16x32xf32>
    %14 = arith.addf %6, %13 : vector<16x32xf32>
    %c0_8 = arith.constant 0 : index
    %c0_9 = arith.constant 0 : index
    %15 = vector.load %arg5[%c0_8, %c0_9] : memref<16x32xf32, #tpu.memory_space<vmem>>, vector<16x32xf32>
    tpu.vector_store %arg5[%c0_8, %c0_9], %14 {strides = array<i32>} : memref<16x32xf32, #tpu.memory_space<vmem>>, vector<16x32xf32>,
    %16 = arith.mulf %6, %6 : vector<16x32xf32>
    %17 = arith.addf %16, %11 : vector<16x32xf32>
    %cst_10 = arith.constant 1.000000e+00 : f32
    %18 = vector.broadcast %cst_10 : f32 to vector<16x32xf32>
    %19 = arith.subf %17, %18 : vector<16x32xf32>
    %20 = arith.subf %19, %7 : vector<16x32xf32>
    %cst_11 = arith.constant dense<0.000000e+00> : vector<16xf32>
    %21 = vector.multi_reduction <add>, %20, %cst_11 [1] : vector<16x32xf32> to vector<16xf32>
    %22 = vector.shape_cast %21 : vector<16xf32> to vector<16x1xf32>
    %cst_12 = arith.constant 3.200000e+01 : f32
    %23 = vector.broadcast %cst_12 : f32 to vector<16x1xf32>
    %24 = arith.divf %22, %23 : vector<16x1xf32>
    %cst_13 = arith.constant 5.000000e-01 : f32
    %25 = vector.broadcast %cst_13 : f32 to vector<16x1xf32>
    %26 = arith.mulf %25, %24 : vector<16x1xf32>
    %cst_14 = arith.constant 1.000000e-01 : f32
    %27 = vector.broadcast %cst_14 : f32 to vector<16x1xf32>
    %28 = arith.maximumf %26, %27 : vector<16x1xf32>
    %c0_15 = arith.constant 0 : index
    %c0_16 = arith.constant 0 : index
    %29 = vector.load %arg6[%c0_15, %c0_16] : memref<16x1xf32, #tpu.memory_space<vmem>>, vector<16x1xf32>
    tpu.vector_store %arg6[%c0_15, %c0_16], %28 {strides = array<i32>} : memref<16x1xf32, #tpu.memory_space<vmem>>, vector<16x1xf32>,
    return
  }
  func.func @transform_0(%arg0: i32) -> (i32, i32) {
    %c0_i32 = arith.constant 0 : i32
    %c0_i32_0 = arith.constant 0 : i32
    return %arg0, %c0_i32 : i32, i32
  }
  func.func @transform_1(%arg0: i32) -> (i32, i32) {
    %c0_i32 = arith.constant 0 : i32
    %c0_i32_0 = arith.constant 0 : i32
    %c0_i32_1 = arith.constant 0 : i32
    return %c0_i32, %c0_i32_0 : i32, i32
  }
  func.func @transform_2(%arg0: i32) -> (i32, i32) {
    %c0_i32 = arith.constant 0 : i32
    %c0_i32_0 = arith.constant 0 : i32
    %c0_i32_1 = arith.constant 0 : i32
    return %c0_i32, %c0_i32_0 : i32, i32
  }
  func.func @transform_3(%arg0: i32) -> (i32, i32) {
    %c0_i32 = arith.constant 0 : i32
    %c0_i32_0 = arith.constant 0 : i32
    return %arg0, %c0_i32 : i32, i32
  }
  func.func @transform_4(%arg0: i32) -> (i32, i32) {
    %c0_i32 = arith.constant 0 : i32
    %c0_i32_0 = arith.constant 0 : i32
    return %arg0, %c0_i32 : i32, i32
  }
  func.func @transform_5(%arg0: i32) -> (i32, i32) {
    %c0_i32 = arith.constant 0 : i32
    %c0_i32_0 = arith.constant 0 : i32
    return %arg0, %c0_i32 : i32, i32
  }
}

</mosaic_0001>

<llo_original>
// kernel: tpu_custom_call.1
$region0: #{tpu_custom_call.1}
  #allocation0 [shape = 'u32[]', space=smem, size = 0x4, offset = 0x4, fixed_abs, tag = 'smem constant byte address 0x4 - core index']
  #allocation1 [shape = 'u32[144,128]{1,0:T(1,128)}', space=vmem, size = 0x12000, scoped, tag = 'internal scratch']
  %s0 = inlined_call_operand.hbm [shape: f32[16,32], index: 0, kind: input, shape index: {}]
  %s1 = inlined_call_operand.hbm [shape: f32[32,64], index: 1, kind: input, shape index: {}]
  %s2 = inlined_call_operand.vmem [shape: f32[1,64], index: 2, kind: input, shape index: {}]
  %s3 = inlined_call_operand.hbm [shape: f32[16,32], index: 3, kind: input, shape index: {}]
  %s4 = inlined_call_operand.hbm [shape: f32[16,32], index: 4, kind: output, shape index: {0}]
  %s5 = inlined_call_operand.vmem [shape: f32[16,1], index: 5, kind: output, shape index: {1}]
  %6 = xla_tuple %s4, %s5
  %s7 = sld [smem:[#allocation0]]
  $region46: #{tpu_custom_call.1} parent=0
    _
  %s9 = ssub.s32 1, %s7
  %s10 = scalar_select 0, %s9, %s7
  $region1: #{tpu_custom_call.1} parent=0
    #allocation2 [shape = 'u8[8192]{0}', space=vmem, size = 0x2000, scoped, tag = 'input window, operand 0, single buffered']
    #allocation3 [shape = 's32[1]{0}', space=sflag, size = 0x4, scoped, tag = 'scoped memory for tpu_custom_call.1']
    #allocation4 [shape = 's32[1]{0}', space=sflag, size = 0x4, scoped, tag = 'scoped memory for tpu_custom_call.1']
    #allocation5 [shape = 'u8[16384]{0}', space=vmem, size = 0x4000, scoped, tag = 'input window, operand 1, single buffered']
    #allocation6 [shape = 's32[1]{0}', space=sflag, size = 0x4, scoped, tag = 'scoped memory for tpu_custom_call.1']
    #allocation7 [shape = 'u8[8192]{0}', space=vmem, size = 0x2000, scoped, tag = 'input window, operand 3, single buffered']
    #allocation8 [shape = 'u8[8192]{0}', space=vmem, size = 0x2000, scoped, tag = 'output window, operand 0, single buffered']
    %11 = vsyncpa [#allocation3], 0
    %12 = vsyncpa [#allocation6], 0
    %13 = vsyncpa [#allocation4], 0
    // Predicated region
    $region2: #{tpu_custom_call.1} parent=1 // pred_check
      _
    $region3: #{tpu_custom_call.1} parent=1 // pred_check_branch
      %15 = sbr.rel (0) target = $region5
    $region4: #{tpu_custom_call.1} parent=1 // pred_region
      %s17 = ssub.s32 256, 256
      %18 = vsyncadd [#allocation3], %s17
      %s19 = sshll.u32 [#allocation2], 4
      %s20 = int_to_ptr.vmem [resolvable:$true] %s19
      %25 = dma.hbm_to_vmem [thread:$0]  %s0, 256, %s20, [#allocation3], 128, 128, 8
    $region5: #{tpu_custom_call.1} parent=1 // pred_fallthru
      _
    // Predicated region
    $region6: #{tpu_custom_call.1} parent=1 // pred_check
      _
    $region7: #{tpu_custom_call.1} parent=1 // pred_check_branch
      %27 = sbr.rel (0) target = $region9
    $region8: #{tpu_custom_call.1} parent=1 // pred_region
      %s29 = ssub.s32 512, 512
      %30 = vsyncadd [#allocation6], %s29
      %s31 = sshll.u32 [#allocation5], 4
      %s32 = int_to_ptr.vmem [resolvable:$true] %s31
      %37 = dma.hbm_to_vmem [thread:$0]  %s1, 512, %s32, [#allocation6], 128, 128, 8
    $region9: #{tpu_custom_call.1} parent=1 // pred_fallthru
      _
    // Predicated region
    $region10: #{tpu_custom_call.1} parent=1 // pred_check
      _
    $region11: #{tpu_custom_call.1} parent=1 // pred_check_branch
      %39 = sbr.rel (0) target = $region13
    $region12: #{tpu_custom_call.1} parent=1 // pred_region
      _
    $region13: #{tpu_custom_call.1} parent=1 // pred_fallthru
      _
    // Predicated region
    $region14: #{tpu_custom_call.1} parent=1 // pred_check
      _
    $region15: #{tpu_custom_call.1} parent=1 // pred_check_branch
      %41 = sbr.rel (0) target = $region17
    $region16: #{tpu_custom_call.1} parent=1 // pred_region
      %s43 = ssub.s32 256, 256
      %44 = vsyncadd [#allocation6], %s43
      %s45 = sshll.u32 [#allocation7], 4
      %s46 = int_to_ptr.vmem [resolvable:$true] %s45
      %51 = dma.hbm_to_vmem [thread:$0]  %s3, 256, %s46, [#allocation6], 128, 128, 8
    $region17: #{tpu_custom_call.1} parent=1 // pred_fallthru
      _
    // Predicated region
    $region18: #{tpu_custom_call.1} parent=1 // pred_check
      _
    $region19: #{tpu_custom_call.1} parent=1 // pred_check_branch
      %53 = sbr.rel (0) target = $region21
    $region20: #{tpu_custom_call.1} parent=1 // pred_region
      %54 = dma.done [#allocation3], 256
    $region21: #{tpu_custom_call.1} parent=1 // pred_fallthru
      _
    // Predicated region
    $region22: #{tpu_custom_call.1} parent=1 // pred_check
      _
    $region23: #{tpu_custom_call.1} parent=1 // pred_check_branch
      %56 = sbr.rel (0) target = $region25
    $region24: #{tpu_custom_call.1} parent=1 // pred_region
      %57 = dma.done [#allocation6], 512
    $region25: #{tpu_custom_call.1} parent=1 // pred_fallthru
      _
    // Predicated region
    $region26: #{tpu_custom_call.1} parent=1 // pred_check
      _
    $region27: #{tpu_custom_call.1} parent=1 // pred_check_branch
      %59 = sbr.rel (0) target = $region29
    $region28: #{tpu_custom_call.1} parent=1 // pred_region
      %60 = dma.done [#allocation6], 256
    $region29: #{tpu_custom_call.1} parent=1 // pred_fallthru
      _
    %v61 = vld [vmem:[#allocation2] sm:$0xff]
    %v62 = vld [vmem:[#allocation2 + $0x8] sm:$0xff]
    %v63 = vld [vmem:[#allocation5] sm:$0xff]
    %v64 = vld [vmem:[#allocation5 + $0x8] sm:$0xff]
    %v65 = vld [vmem:[#allocation5 + $0x10] sm:$0xff]
    %v66 = vld [vmem:[#allocation5 + $0x18] sm:$0xff]
    %v67 = vld [vmem:[%s2] sm:$0x1]
    %v69 = vlaneseq
    %v70 = vshrl.u32 %v69, 7
    %v71 = vsub.s32 0, %v70
    %v72 = vrot.slane %v67, %v71
    %vm74 = vcmask 261120
    %v76 = vsel %vm74, %v61, 0
    %v79 = vsel %vm74, %v62, 0
    %81 = vmatprep.subr.mxu0 0.0
    %82 = vmatpush1.msra.mxu0 %v63
    %83 = vmatprep.subr.mxu0 0.0
    %84 = vmatpush1.msra.mxu0 %v64
    %85 = vmatprep.subr.mxu0 0.0
    %86 = vmatpush1.msra.mxu0 %v65
    %87 = vmatprep.subr.mxu0 0.0
    %88 = vmatpush1.msra.mxu0 %v66
    %89 = vmatprep.subr.mxu0 0.0
    %90 = vmatpush1.msra.mxu0 0.0
    %91 = vmatprep.subr.mxu0 0.0
    %92 = vmatpush1.msra.mxu0 0.0
    %93 = vmatprep.subr.mxu0 0.0
    %94 = vmatpush1.msra.mxu0 0.0
    %95 = vmatprep.subr.mxu0 0.0
    %96 = vmatpush1.msra.mxu0 0.0
    %97 = vmatprep.subr.mxu0 0.0
    %98 = vmatpush1.msra.mxu0 0.0
    %99 = vmatprep.subr.mxu0 0.0
    %100 = vmatpush1.msra.mxu0 0.0
    %101 = vmatprep.subr.mxu0 0.0
    %102 = vmatpush1.msra.mxu0 0.0
    %103 = vmatprep.subr.mxu0 0.0
    %104 = vmatpush1.msra.mxu0 0.0
    %105 = vmatprep.subr.mxu0 0.0
    %106 = vmatpush1.msra.mxu0 0.0
    %107 = vmatprep.subr.mxu0 0.0
    %108 = vmatpush1.msra.mxu0 0.0
    %109 = vmatprep.subr.mxu0 0.0
    %110 = vmatpush1.msra.mxu0 0.0
    %111 = vmatprep.subr.mxu0 0.0
    %112 = vmatpush1.msra.mxu0 0.0
    %113 = vmatprep.subr.mxu0 0.0
    %114 = vmatpush1.msra.mxu0 0.0
    %115 = vmatprep.subr.mxu0 0.0
    %116 = vmatpush1.msra.mxu0 0.0
    %117 = vmatprep.subr.mxu0 0.0
    %118 = vmatpush1.msra.mxu0 0.0
    %119 = vmatprep.subr.mxu0 0.0
    %120 = vmatpush1.msra.mxu0 0.0
    %121 = vmatprep.subr.mxu0 0.0
    %122 = vmatpush1.msra.mxu0 0.0
    %123 = vmatprep.subr.mxu0 0.0
    %124 = vmatpush1.msra.mxu0 0.0
    %125 = vmatprep.subr.mxu0 0.0
    %126 = vmatpush1.msra.mxu0 0.0
    %127 = vmatprep.subr.mxu0 0.0
    %128 = vmatpush1.msra.mxu0 0.0
    %129 = vmatprep.subr.mxu0 0.0
    %130 = vmatpush1.msra.mxu0 0.0
    %131 = vmatprep.subr.mxu0 0.0
    %132 = vmatpush1.msra.mxu0 0.0
    %133 = vmatprep.subr.mxu0 0.0
    %134 = vmatpush1.msra.mxu0 0.0
    %135 = vmatprep.subr.mxu0 0.0
    %136 = vmatpush1.msra.mxu0 0.0
    %137 = vmatprep.subr.mxu0 0.0
    %138 = vmatpush1.msra.mxu0 0.0
    %139 = vmatprep.subr.mxu0 0.0
    %140 = vmatpush1.msra.mxu0 0.0
    %141 = vmatprep.subr.mxu0 0.0
    %142 = vmatpush1.msra.mxu0 0.0
    %143 = vmatprep.subr.mxu0 0.0
    %144 = vmatpush1.msra.mxu0 0.0
    %145 = vmatprep.mubr.f32.mxu0 0.0
    %146 = vmatmul.mubr.f32.gmra.mrb[0].mxu0 %v76
    %v147 = vpop.f32.mrb[0].mxu0
    %v148 = vadd.f32 %v72, %v147
    %v149 = vpop.f32.mrb[0].mxu0
    %150 = vmatprep.mubr.f32.mxu0 0.0
    %151 = vmatmul.mubr.f32.gmra.mrb[0].mxu0 %v79
    %v152 = vpop.f32.mrb[0].mxu0
    %v153 = vadd.f32 %v72, %v152
    %v154 = vpop.f32.mrb[0].mxu0
    %155 = vdwg.mxu0
    %v156 = vmul.f32 %v148, 0.5
    %v157 = vmul.f32 %v153, 0.5
    %v158 = vmul.f32 %v156, 1.442695
    %v159 = vpow.pop %v158
    %v160 = vmul.f32 %v157, 1.442695
    %v161 = vpow.pop %v160
    %v162 = vmul.f32 %v159, %v159
    %v163 = vmul.f32 %v161, %v161
    %v164 = vld [vmem:[#allocation7] sm:$0xff]
    %v165 = vld [vmem:[#allocation7 + $0x8] sm:$0xff]
    %168 = vrot.lane.b32.xlu0 %v159, 96
    %v169 = vpop.permute.xlu0 %168
    %170 = vrot.lane.b32.xlu0 %v161, 96
    %v171 = vpop.permute.xlu0 %170
    %v174 = vmul.f32 %v164, %v169
    %v175 = vmul.f32 %v165, %v171
    %v176 = vadd.f32 %v148, %v174
    %v177 = vadd.f32 %v153, %v175
    %178 = vst.msk [vmem:[#allocation8] sm:$0xff] %vm74, %v176
    %179 = vst.msk [vmem:[#allocation8 + $0x8] sm:$0xff] %vm74, %v177
    %v180 = vmul.f32 %v148, %v148
    %v181 = vmul.f32 %v153, %v153
    %184 = vrot.lane.b32.xlu0 %v162, 96
    %v185 = vpop.permute.xlu0 %184
    %186 = vrot.lane.b32.xlu0 %v163, 96
    %v187 = vpop.permute.xlu0 %186
    %v190 = vadd.f32 %v180, %v185
    %v191 = vadd.f32 %v181, %v187
    %v192 = vsub.f32 %v190, 1.0
    %v193 = vsub.f32 %v191, 1.0
    %196 = vrot.lane.b32.xlu0 %v148, 96
    %v197 = vpop.permute.xlu0 %196
    %198 = vrot.lane.b32.xlu0 %v153, 96
    %v199 = vpop.permute.xlu0 %198
    %v202 = vsub.f32 %v192, %v197
    %v203 = vsub.f32 %v193, %v199
    %v204 = vsel %vm74, %v202, 0.0
    %205 = vadd.xlane.f32.xlu0 %v204
    %v206 = vpop.xlane.xlu0 %205
    %v207 = vsel %vm74, %v203, 0.0
    %208 = vadd.xlane.f32.xlu0 %v207
    %v209 = vpop.xlane.xlu0 %208
    %v210 = vrcp.pop 32.0
    %v211 = vmul.f32 %v206, %v210
    %v212 = vmul.f32 %v209, %v210
    %v213 = vmul.f32 %v211, 0.5
    %v214 = vmul.f32 %v212, 0.5
    %v215 = vmax.f32 %v213, 0.1
    %v216 = vmax.f32 %v214, 0.1
    %vm217 = vcmask 7168
    %218 = vst.msk [vmem:[%s5] sm:$0xff] %vm217, %v215
    %219 = vst.msk [vmem:[%s5 + $0x8] sm:$0xff] %vm217, %v216
    // Predicated region
    $region30: #{tpu_custom_call.1} parent=1 // pred_check
      _
    $region31: #{tpu_custom_call.1} parent=1 // pred_check_branch
      %221 = sbr.rel (0) target = $region33
    $region32: #{tpu_custom_call.1} parent=1 // pred_region
      %s223 = ssub.s32 256, 256
      %224 = vsyncadd [#allocation4], %s223
      %s225 = sshll.u32 [#allocation8], 4
      %s226 = int_to_ptr.vmem [resolvable:$true] %s225
      %231 = dma.vmem_to_hbm [thread:$0]  %s226, 256, %s4, [#allocation4], 128, 128, 8
    $region33: #{tpu_custom_call.1} parent=1 // pred_fallthru
      _
    // Predicated region
    $region34: #{tpu_custom_call.1} parent=1 // pred_check
      _
    $region35: #{tpu_custom_call.1} parent=1 // pred_check_branch
      %233 = sbr.rel (0) target = $region37
    $region36: #{tpu_custom_call.1} parent=1 // pred_region
      _
    $region37: #{tpu_custom_call.1} parent=1 // pred_fallthru
      _
    // Predicated region
    $region38: #{tpu_custom_call.1} parent=1 // pred_check
      _
    $region39: #{tpu_custom_call.1} parent=1 // pred_check_branch
      %235 = sbr.rel (0) target = $region41
    $region40: #{tpu_custom_call.1} parent=1 // pred_region
      %236 = dma.done [#allocation4], 256
    $region41: #{tpu_custom_call.1} parent=1 // pred_fallthru
      _
    // Predicated region
    $region42: #{tpu_custom_call.1} parent=1 // pred_check
      _
    $region43: #{tpu_custom_call.1} parent=1 // pred_check_branch
      %238 = sbr.rel (0) target = $region45
    $region44: #{tpu_custom_call.1} parent=1 // pred_region
      _
    $region45: #{tpu_custom_call.1} parent=1 // pred_fallthru
      _
    %239 = vsyncpa [#allocation3], 1
    %240 = vsyncpa [#allocation6], 1
    %241 = vsyncpa [#allocation4], 1

</llo_original>
